<compile_context>
chip_gen: v7x
topology: tpu7x:2x2x1
jax: 0.10.0
libtpu: 0.0.40
codegen_flags: <defaults>
</compile_context>

<pallas_src>
import math

import jax
import jax.numpy as jnp
from jax import lax
from jax.experimental import pallas as pl
from jax.experimental.pallas import tpu as pltpu


_INV_SQRT2 = 1.0 / math.sqrt(2.0)


def _gelu_exact(x):
    # PyTorch F.gelu default: 0.5 * x * (1 + erf(x / sqrt(2)))
    return 0.5 * x * (1.0 + lax.erf(x * _INV_SQRT2))


def _round_up(x, m):
    return ((x + m - 1) // m) * m


def _cdiv(a, b):
    return -(-a // b)


# Weights in PyTorch layout (out_features, in_features); biases as (out, 1)
# columns.  Transposed orientation (batch on lanes):
#   h1    = gelu(W0 @ x^T + b0)   (D1, TB)
#   h2    = gelu(W1 @ h1  + b1)   (D2, TB)
#   out^T =      W2 @ h2  + b2    (out_dim, TB)   <- lane-dense store
def _mlp_readout_kernel(x_ref, w0_ref, b0_ref, w1_ref, b1_ref, w2_ref, b2_ref,
                        o_ref):
    x = x_ref[...]                                     # (TB, D)

    # Layer 0: A @ B^T (contract last dims of both operands) -> (D1, TB).
    h = lax.dot_general(w0_ref[...], x, (((1,), (1,)), ((), ())),
                        preferred_element_type=jnp.float32)
    h = _gelu_exact(h + b0_ref[...])

    # Layer 1: canonical matmul (D2, D1) @ (D1, TB).
    h = jnp.dot(w1_ref[...], h, preferred_element_type=jnp.float32)
    h = _gelu_exact(h + b1_ref[...])

    # Layer 2: (out_dim, D2) @ (D2, TB) -> lane-dense (out_dim, TB) slab.
    o_ref[...] = (jnp.dot(w2_ref[...], h, preferred_element_type=jnp.float32)
                  + b2_ref[...])


def _choose_batch_tile(B, tb_max):
    """Pick (TB, n_tiles).

    Small B -> a single exact tile (block == full dims, no padding, no copy).
    B >= 256 -> at least 2 tiles (keeps both v7x TensorCores busy) with TB a
    multiple of 128 so the lane-dense output block satisfies the (8, 128)
    constraint; the ragged last tile uses Pallas' clipped edge blocks, so
    there is no jnp.pad copy and no extra HBM traffic.
    """
    tb_max = max(128, (tb_max // 128) * 128)
    if B < 256:
        return B, 1
    n = max(2, _cdiv(B, tb_max))
    tb = min(_round_up(_cdiv(B, n), 128), tb_max)
    return tb, _cdiv(B, tb)


def classifier3_forward(x, params, *, tb_max=2048):
    """x: (B, D) float32; params: w0,b0,w1,b1,w2,b2 in (out,in)/(out,1) layout."""
    B, D = x.shape
    D1 = params["w0"].shape[0]          # D // 2
    D2 = params["w1"].shape[0]          # D // 4
    out_dim = params["w2"].shape[0]

    TB, n_tiles = _choose_batch_tile(B, tb_max)

    x_spec = pl.BlockSpec((TB, D), lambda i: (i, 0))
    out_spec = pl.BlockSpec((out_dim, TB), lambda i: (0, i))
    resident = lambda shape: pl.BlockSpec(shape, lambda i: (0, 0))

    grid_spec = pltpu.PrefetchScalarGridSpec(
        num_scalar_prefetch=0,
        grid=(n_tiles,),
        in_specs=[
            x_spec,
            resident((D1, D)), resident((D1, 1)),
            resident((D2, D1)), resident((D2, 1)),
            resident((out_dim, D2)), resident((out_dim, 1)),
        ],
        out_specs=out_spec,
    )

    flops = 2 * B * (D * D1 + D1 * D2 + D2 * out_dim)
    bytes_accessed = 4 * (B * D + B * out_dim
                          + D1 * (D + 1) + D2 * (D1 + 1) + out_dim * (D2 + 1))
    cost = pl.CostEstimate(flops=flops,
                           transcendentals=B * (D1 + D2),
                           bytes_accessed=bytes_accessed)

    out_t = pl.pallas_call(
        _mlp_readout_kernel,
        out_shape=jax.ShapeDtypeStruct((out_dim, B), jnp.float32),
        grid_spec=grid_spec,
        compiler_params=pltpu.CompilerParams(
            dimension_semantics=("parallel",),   # v7x: 2 TCs split the batch grid
        ),
        cost_estimate=cost,
    )(x, params["w0"], params["b0"], params["w1"], params["b1"],
      params["w2"], params["b2"])

    return out_t.T                               # (B, out_dim)


def init_params(key, input_dim, output_dim):
    """MLPReadout(input_dim, output_dim, L=2):
       Linear(D, D//2), Linear(D//2, D//4), Linear(D//4, output_dim).
       Weights stored PyTorch-style as (out, in); biases as (out, 1)."""
    dims = [(input_dim, input_dim // 2),
            (input_dim // 2, input_dim // 4),
            (input_dim // 4, output_dim)]
    params = {}
    for i, (fan_in, fan_out) in enumerate(dims):
        key, kw, kb = jax.random.split(key, 3)
        bound = 1.0 / math.sqrt(fan_in)
        params[f"w{i}"] = jax.random.uniform(
            kw, (fan_out, fan_in), jnp.float32, -bound, bound)
        params[f"b{i}"] = jax.random.uniform(
            kb, (fan_out, 1), jnp.float32, -bound, bound)
    return params


def _reference_forward(x, params):
    """Pure-JAX reference for correctness check."""
    h = _gelu_exact(x @ params["w0"].T + params["b0"].T)
    h = _gelu_exact(h @ params["w1"].T + params["b1"].T)
    return h @ params["w2"].T + params["b2"].T


if __name__ == "__main__":
    input_dim = 32   # graph-embedding hidden dim
    output_dim = 1   # regression target

    key = jax.random.PRNGKey(0)
    key, kx, kx2 = jax.random.split(key, 3)
    params = init_params(key, input_dim, output_dim)

    # Small primary check (B = 8): single exact tile.
    x = jax.random.normal(kx, (8, input_dim), jnp.float32)
    out = jax.block_until_ready(classifier3_forward(x, params))
    ref = _reference_forward(x, params)
    assert out.shape == (8, output_dim)
    assert jnp.allclose(out, ref, atol=1e-5, rtol=1e-5), "mismatch (B=8)"

    # Secondary check: multiple grid steps + clipped ragged last tile.
    x2 = jax.random.normal(kx2, (1040, input_dim), jnp.float32)
    out2 = jax.block_until_ready(classifier3_forward(x2, params))
    ref2 = _reference_forward(x2, params)
    assert out2.shape == (1040, output_dim)
    assert jnp.allclose(out2, ref2, atol=1e-5, rtol=1e-5), "mismatch (B=1040)"

    print("KERNEL_OK")
</pallas_src>

<mosaic_0001>
module attributes {stable_mosaic.version = 11 : i64} {
  func.func @_mlp_readout_kernel(%arg0: i32, %arg1: memref<8x32xf32, #tpu.memory_space<vmem>>, %arg2: memref<16x32xf32, #tpu.memory_space<vmem>>, %arg3: memref<16x1xf32, #tpu.memory_space<vmem>>, %arg4: memref<8x16xf32, #tpu.memory_space<vmem>>, %arg5: memref<8x1xf32, #tpu.memory_space<vmem>>, %arg6: memref<1x8xf32, #tpu.memory_space<vmem>>, %arg7: memref<1x1xf32, #tpu.memory_space<vmem>>, %arg8: memref<1x8xf32, #tpu.memory_space<vmem>>) attributes {dimension_semantics = [#tpu.dimension_semantics<parallel>], iteration_bounds = array<i64: 1>, scalar_prefetch = 0 : i64, scratch_operands = 0 : i64, tpu.core_type = #tpu.core_type<tc>, window_params = [{transform_indices = @transform_0, window_bounds = array<i64: 8, 32>}, {pipeline_mode = #tpu.pipeline_mode<synchronous>, transform_indices = @transform_1, window_bounds = array<i64: 16, 32>}, {pipeline_mode = #tpu.pipeline_mode<synchronous>, transform_indices = @transform_2, window_bounds = array<i64: 16, 1>}, {pipeline_mode = #tpu.pipeline_mode<synchronous>, transform_indices = @transform_3, window_bounds = array<i64: 8, 16>}, {pipeline_mode = #tpu.pipeline_mode<synchronous>, transform_indices = @transform_4, window_bounds = array<i64: 8, 1>}, {pipeline_mode = #tpu.pipeline_mode<synchronous>, transform_indices = @transform_5, window_bounds = array<i64: 1, 8>}, {pipeline_mode = #tpu.pipeline_mode<synchronous>, transform_indices = @transform_6, window_bounds = array<i64: 1, 1>}, {transform_indices = @transform_7, window_bounds = array<i64: 1, 8>}]} {
    %c0 = arith.constant 0 : index
    %c0_0 = arith.constant 0 : index
    %0 = vector.load %arg1[%c0, %c0_0] : memref<8x32xf32, #tpu.memory_space<vmem>>, vector<8x32xf32>
    %c0_1 = arith.constant 0 : index
    %c0_2 = arith.constant 0 : index
    %1 = vector.load %arg2[%c0_1, %c0_2] : memref<16x32xf32, #tpu.memory_space<vmem>>, vector<16x32xf32>
    %cst = arith.constant dense<0.000000e+00> : vector<16x8xf32>
    %2 = tpu.matmul %1, %0, %cst {dimension_numbers = #tpu.dot_dimension_numbers<[1], [1], [0], [0], [0, 0, 1, 0], [], []>} : vector<16x32xf32>, vector<8x32xf32>, vector<16x8xf32> -> vector<16x8xf32>
    %c0_3 = arith.constant 0 : index
    %c0_4 = arith.constant 0 : index
    %3 = vector.load %arg3[%c0_3, %c0_4] : memref<16x1xf32, #tpu.memory_space<vmem>>, vector<16x1xf32>
    %4 = vector.broadcast %3 : vector<16x1xf32> to vector<16x8xf32>
    %5 = arith.addf %2, %4 : vector<16x8xf32>
    %cst_5 = arith.constant 5.000000e-01 : f32
    %6 = vector.broadcast %cst_5 : f32 to vector<16x8xf32>
    %7 = arith.mulf %6, %5 : vector<16x8xf32>
    %cst_6 = arith.constant 0.707106769 : f32
    %8 = vector.broadcast %cst_6 : f32 to vector<16x8xf32>
    %9 = arith.mulf %5, %8 : vector<16x8xf32>
    %10 = math.erf %9 : vector<16x8xf32>
    %cst_7 = arith.constant 1.000000e+00 : f32
    %11 = vector.broadcast %cst_7 : f32 to vector<16x8xf32>
    %12 = arith.addf %11, %10 : vector<16x8xf32>
    %13 = arith.mulf %7, %12 : vector<16x8xf32>
    %c0_8 = arith.constant 0 : index
    %c0_9 = arith.constant 0 : index
    %14 = vector.load %arg4[%c0_8, %c0_9] : memref<8x16xf32, #tpu.memory_space<vmem>>, vector<8x16xf32>
    %cst_10 = arith.constant dense<0.000000e+00> : vector<8x8xf32>
    %15 = tpu.matmul %14, %13, %cst_10 {dimension_numbers = #tpu.dot_dimension_numbers<[1], [0], [0], [1], [0, 0, 1, 1], [], []>} : vector<8x16xf32>, vector<16x8xf32>, vector<8x8xf32> -> vector<8x8xf32>
    %c0_11 = arith.constant 0 : index
    %c0_12 = arith.constant 0 : index
    %16 = vector.load %arg5[%c0_11, %c0_12] : memref<8x1xf32, #tpu.memory_space<vmem>>, vector<8x1xf32>
    %17 = vector.broadcast %16 : vector<8x1xf32> to vector<8x8xf32>
    %18 = arith.addf %15, %17 : vector<8x8xf32>
    %cst_13 = arith.constant 5.000000e-01 : f32
    %19 = vector.broadcast %cst_13 : f32 to vector<8x8xf32>
    %20 = arith.mulf %19, %18 : vector<8x8xf32>
    %cst_14 = arith.constant 0.707106769 : f32
    %21 = vector.broadcast %cst_14 : f32 to vector<8x8xf32>
    %22 = arith.mulf %18, %21 : vector<8x8xf32>
    %23 = math.erf %22 : vector<8x8xf32>
    %cst_15 = arith.constant 1.000000e+00 : f32
    %24 = vector.broadcast %cst_15 : f32 to vector<8x8xf32>
    %25 = arith.addf %24, %23 : vector<8x8xf32>
    %26 = arith.mulf %20, %25 : vector<8x8xf32>
    %c0_16 = arith.constant 0 : index
    %c0_17 = arith.constant 0 : index
    %27 = vector.load %arg6[%c0_16, %c0_17] : memref<1x8xf32, #tpu.memory_space<vmem>>, vector<1x8xf32>
    %cst_18 = arith.constant dense<0.000000e+00> : vector<1x8xf32>
    %28 = tpu.matmul %27, %26, %cst_18 {dimension_numbers = #tpu.dot_dimension_numbers<[1], [0], [0], [1], [0, 0, 1, 1], [], []>} : vector<1x8xf32>, vector<8x8xf32>, vector<1x8xf32> -> vector<1x8xf32>
    %c0_19 = arith.constant 0 : index
    %c0_20 = arith.constant 0 : index
    %29 = vector.load %arg7[%c0_19, %c0_20] : memref<1x1xf32, #tpu.memory_space<vmem>>, vector<1x1xf32>
    %30 = vector.broadcast %29 : vector<1x1xf32> to vector<1x8xf32>
    %31 = arith.addf %28, %30 : vector<1x8xf32>
    %c0_21 = arith.constant 0 : index
    %c0_22 = arith.constant 0 : index
    %32 = vector.load %arg8[%c0_21, %c0_22] : memref<1x8xf32, #tpu.memory_space<vmem>>, vector<1x8xf32>
    tpu.vector_store %arg8[%c0_21, %c0_22], %31 {strides = array<i32>} : memref<1x8xf32, #tpu.memory_space<vmem>>, vector<1x8xf32>,
    return
  }
  func.func @transform_0(%arg0: i32) -> (i32, i32) {
    %c0_i32 = arith.constant 0 : i32
    %c0_i32_0 = arith.constant 0 : i32
    return %arg0, %c0_i32 : i32, i32
  }
  func.func @transform_1(%arg0: i32) -> (i32, i32) {
    %c0_i32 = arith.constant 0 : i32
    %c0_i32_0 = arith.constant 0 : i32
    %c0_i32_1 = arith.constant 0 : i32
    return %c0_i32, %c0_i32_0 : i32, i32
  }
  func.func @transform_2(%arg0: i32) -> (i32, i32) {
    %c0_i32 = arith.constant 0 : i32
    %c0_i32_0 = arith.constant 0 : i32
    %c0_i32_1 = arith.constant 0 : i32
    return %c0_i32, %c0_i32_0 : i32, i32
  }
  func.func @transform_3(%arg0: i32) -> (i32, i32) {
    %c0_i32 = arith.constant 0 : i32
    %c0_i32_0 = arith.constant 0 : i32
    %c0_i32_1 = arith.constant 0 : i32
    return %c0_i32, %c0_i32_0 : i32, i32
  }
  func.func @transform_4(%arg0: i32) -> (i32, i32) {
    %c0_i32 = arith.constant 0 : i32
    %c0_i32_0 = arith.constant 0 : i32
    %c0_i32_1 = arith.constant 0 : i32
    return %c0_i32, %c0_i32_0 : i32, i32
  }
  func.func @transform_5(%arg0: i32) -> (i32, i32) {
    %c0_i32 = arith.constant 0 : i32
    %c0_i32_0 = arith.constant 0 : i32
    %c0_i32_1 = arith.constant 0 : i32
    return %c0_i32, %c0_i32_0 : i32, i32
  }
  func.func @transform_6(%arg0: i32) -> (i32, i32) {
    %c0_i32 = arith.constant 0 : i32
    %c0_i32_0 = arith.constant 0 : i32
    %c0_i32_1 = arith.constant 0 : i32
    return %c0_i32, %c0_i32_0 : i32, i32
  }
  func.func @transform_7(%arg0: i32) -> (i32, i32) {
    %c0_i32 = arith.constant 0 : i32
    %c0_i32_0 = arith.constant 0 : i32
    return %c0_i32, %arg0 : i32, i32
  }
}

</mosaic_0001>

<llo_original>
// kernel: tpu_custom_call.1
$region0: #{tpu_custom_call.1}
  #allocation0 [shape = 'u32[]', space=smem, size = 0x4, offset = 0x4, fixed_abs, tag = 'smem constant byte address 0x4 - core index']
  #allocation1 [shape = 'u32[144,128]{1,0:T(1,128)}', space=vmem, size = 0x12000, scoped, tag = 'internal scratch']
  #allocation2 [shape = 'f32[1,1]{1,0:T(1,128)S(1)}', space=vmem, size = 0x200, scoped, tag = 'scoped memory for tpu_custom_call.1']
  %s0 = inlined_call_operand.vmem [shape: f32[8,32], index: 0, kind: input, shape index: {}]
  %s1 = inlined_call_operand.vmem [shape: f32[16,32], index: 1, kind: input, shape index: {}]
  %s2 = inlined_call_operand.vmem [shape: f32[16,1], index: 2, kind: input, shape index: {}]
  %s3 = inlined_call_operand.vmem [shape: f32[8,16], index: 3, kind: input, shape index: {}]
  %s4 = inlined_call_operand.vmem [shape: f32[8,1], index: 4, kind: input, shape index: {}]
  %s5 = inlined_call_operand.vmem [shape: f32[1,8], index: 5, kind: input, shape index: {}]
  %s6 = inlined_call_operand.<no memory space> [shape: f32[1,1], index: 6, kind: input, shape index: {}]
  %s7 = inlined_call_operand.hbm [shape: f32[1,8], index: 7, kind: output, shape index: {}]
  %s8 = sld [smem:[#allocation0]]
  $region38: #{tpu_custom_call.1} parent=0
    _
  %s10 = ssub.s32 1, %s8
  %s11 = scalar_select 0, %s10, %s8
  %v12 = vstv %s6
  %13 = vst [vmem:[#allocation2] sm:$0x1] %v12
  $region1: #{tpu_custom_call.1} parent=0
    #allocation3 [shape = 'u8[512]{0}', space=vmem, size = 0x400, scoped, tag = 'output window, operand 0, single buffered']
    #allocation4 [shape = 's32[1]{0}', space=sflag, size = 0x4, scoped, tag = 'scoped memory for tpu_custom_call.1']
    %14 = vsyncpa [#allocation4], 0
    // Predicated region
    $region2: #{tpu_custom_call.1} parent=1 // pred_check
      _
    $region3: #{tpu_custom_call.1} parent=1 // pred_check_branch
      %16 = sbr.rel (0) target = $region5
    $region4: #{tpu_custom_call.1} parent=1 // pred_region
      _
    $region5: #{tpu_custom_call.1} parent=1 // pred_fallthru
      _
    // Predicated region
    $region6: #{tpu_custom_call.1} parent=1 // pred_check
      _
    $region7: #{tpu_custom_call.1} parent=1 // pred_check_branch
      %18 = sbr.rel (0) target = $region9
    $region8: #{tpu_custom_call.1} parent=1 // pred_region
      _
    $region9: #{tpu_custom_call.1} parent=1 // pred_fallthru
      _
    // Predicated region
    $region10: #{tpu_custom_call.1} parent=1 // pred_check
      _
    $region11: #{tpu_custom_call.1} parent=1 // pred_check_branch
      %20 = sbr.rel (0) target = $region13
    $region12: #{tpu_custom_call.1} parent=1 // pred_region
      _
    $region13: #{tpu_custom_call.1} parent=1 // pred_fallthru
      _
    // Predicated region
    $region14: #{tpu_custom_call.1} parent=1 // pred_check
      _
    $region15: #{tpu_custom_call.1} parent=1 // pred_check_branch
      %22 = sbr.rel (0) target = $region17
    $region16: #{tpu_custom_call.1} parent=1 // pred_region
      _
    $region17: #{tpu_custom_call.1} parent=1 // pred_fallthru
      _
    // Predicated region
    $region18: #{tpu_custom_call.1} parent=1 // pred_check
      _
    $region19: #{tpu_custom_call.1} parent=1 // pred_check_branch
      %24 = sbr.rel (0) target = $region21
    $region20: #{tpu_custom_call.1} parent=1 // pred_region
      _
    $region21: #{tpu_custom_call.1} parent=1 // pred_fallthru
      _
    // Predicated region
    $region22: #{tpu_custom_call.1} parent=1 // pred_check
      _
    $region23: #{tpu_custom_call.1} parent=1 // pred_check_branch
      %26 = sbr.rel (0) target = $region25
    $region24: #{tpu_custom_call.1} parent=1 // pred_region
      _
    $region25: #{tpu_custom_call.1} parent=1 // pred_fallthru
      _
    // Predicated region
    $region26: #{tpu_custom_call.1} parent=1 // pred_check
      _
    $region27: #{tpu_custom_call.1} parent=1 // pred_check_branch
      %28 = sbr.rel (0) target = $region29
    $region28: #{tpu_custom_call.1} parent=1 // pred_region
      _
    $region29: #{tpu_custom_call.1} parent=1 // pred_fallthru
      _
    %v29 = vld [vmem:[%s0] sm:$0xff]
    %v30 = vld [vmem:[%s1] sm:$0xff]
    %v31 = vld [vmem:[%s1 + $0x8] sm:$0xff]
    %v32 = vld [vmem:[%s2] sm:$0xff]
    %v33 = vld [vmem:[%s2 + $0x8] sm:$0xff]
    %35 = vset.pattern.permute.xlu0 0
    %36 = vperm.xlu0 %35, %v32
    %v37 = vpop.permute.xlu0 %36
    %40 = vset.pattern.permute.xlu0 0
    %41 = vperm.xlu0 %40, %v33
    %v42 = vpop.permute.xlu0 %41
    %vm44 = vcmask 261120
    %v46 = vsel %vm44, %v30, 0
    %v49 = vsel %vm44, %v31, 0
    %v52 = vsel %vm44, %v29, 0
    %54 = vmatprep.subr.mxu0 0.0
    %55 = vmatpush1.xpose.msra.mxu0 %v52
    %56 = vmatprep.subr.mxu0 0.0
    %57 = vmatpush1.xpose.msra.mxu0 0.0
    %58 = vmatprep.subr.mxu0 0.0
    %59 = vmatpush1.xpose.msra.mxu0 0.0
    %60 = vmatprep.subr.mxu0 0.0
    %61 = vmatpush1.xpose.msra.mxu0 0.0
    %62 = vmatprep.subr.mxu0 0.0
    %63 = vmatpush1.xpose.msra.mxu0 0.0
    %64 = vmatprep.subr.mxu0 0.0
    %65 = vmatpush1.xpose.msra.mxu0 0.0
    %66 = vmatprep.subr.mxu0 0.0
    %67 = vmatpush1.xpose.msra.mxu0 0.0
    %68 = vmatprep.subr.mxu0 0.0
    %69 = vmatpush1.xpose.msra.mxu0 0.0
    %70 = vmatprep.subr.mxu0 0.0
    %71 = vmatpush1.xpose.msra.mxu0 0.0
    %72 = vmatprep.subr.mxu0 0.0
    %73 = vmatpush1.xpose.msra.mxu0 0.0
    %74 = vmatprep.subr.mxu0 0.0
    %75 = vmatpush1.xpose.msra.mxu0 0.0
    %76 = vmatprep.subr.mxu0 0.0
    %77 = vmatpush1.xpose.msra.mxu0 0.0
    %78 = vmatprep.subr.mxu0 0.0
    %79 = vmatpush1.xpose.msra.mxu0 0.0
    %80 = vmatprep.subr.mxu0 0.0
    %81 = vmatpush1.xpose.msra.mxu0 0.0
    %82 = vmatprep.subr.mxu0 0.0
    %83 = vmatpush1.xpose.msra.mxu0 0.0
    %84 = vmatprep.subr.mxu0 0.0
    %85 = vmatpush1.xpose.msra.mxu0 0.0
    %86 = vmatprep.subr.mxu0 0.0
    %87 = vmatpush1.xpose.msra.mxu0 0.0
    %88 = vmatprep.subr.mxu0 0.0
    %89 = vmatpush1.xpose.msra.mxu0 0.0
    %90 = vmatprep.subr.mxu0 0.0
    %91 = vmatpush1.xpose.msra.mxu0 0.0
    %92 = vmatprep.subr.mxu0 0.0
    %93 = vmatpush1.xpose.msra.mxu0 0.0
    %94 = vmatprep.subr.mxu0 0.0
    %95 = vmatpush1.xpose.msra.mxu0 0.0
    %96 = vmatprep.subr.mxu0 0.0
    %97 = vmatpush1.xpose.msra.mxu0 0.0
    %98 = vmatprep.subr.mxu0 0.0
    %99 = vmatpush1.xpose.msra.mxu0 0.0
    %100 = vmatprep.subr.mxu0 0.0
    %101 = vmatpush1.xpose.msra.mxu0 0.0
    %102 = vmatprep.subr.mxu0 0.0
    %103 = vmatpush1.xpose.msra.mxu0 0.0
    %104 = vmatprep.subr.mxu0 0.0
    %105 = vmatpush1.xpose.msra.mxu0 0.0
    %106 = vmatprep.subr.mxu0 0.0
    %107 = vmatpush1.xpose.msra.mxu0 0.0
    %108 = vmatprep.subr.mxu0 0.0
    %109 = vmatpush1.xpose.msra.mxu0 0.0
    %110 = vmatprep.subr.mxu0 0.0
    %111 = vmatpush1.xpose.msra.mxu0 0.0
    %112 = vmatprep.subr.mxu0 0.0
    %113 = vmatpush1.xpose.msra.mxu0 0.0
    %114 = vmatprep.subr.mxu0 0.0
    %115 = vmatpush1.xpose.msra.mxu0 0.0
    %116 = vmatprep.subr.mxu0 0.0
    %117 = vmatpush1.xpose.msra.mxu0 0.0
    %118 = vmatprep.mubr.f32.mxu0 0.0
    %119 = vmatmul.mubr.f32.gmra.mrb[0].mxu0 %v46
    %v120 = vpop.f32.mrb[0].mxu0
    %v121 = vadd.f32 %v37, %v120
    %v122 = vpop.f32.mrb[0].mxu0
    %123 = vmatprep.mubr.f32.mxu0 0.0
    %124 = vmatmul.mubr.f32.gmra.mrb[0].mxu0 %v49
    %v125 = vpop.f32.mrb[0].mxu0
    %v126 = vadd.f32 %v42, %v125
    %v127 = vpop.f32.mrb[0].mxu0
    %128 = vdwg.mxu0
    %v129 = vmul.f32 %v121, 0.5
    %v130 = vmul.f32 %v126, 0.5
    %v131 = vmul.f32 %v121, 0.70710677
    %v132 = vmul.f32 %v126, 0.70710677
    %v133 = verf.f32.pop %v131
    %v134 = verf.f32.pop %v132
    %v135 = vadd.f32 %v133, 1.0
    %v136 = vadd.f32 %v134, 1.0
    %v137 = vmul.f32 %v129, %v135
    %v138 = vmul.f32 %v130, %v136
    %v139 = vld [vmem:[%s3] sm:$0xff]
    %v140 = vld [vmem:[%s4] sm:$0xff]
    %142 = vset.pattern.permute.xlu0 0
    %143 = vperm.xlu0 %142, %v140
    %v144 = vpop.permute.xlu0 %143
    %vm146 = vcmask 130048
    %v148 = vsel %vm146, %v139, 0
    %150 = vmatprep.subr.mxu0 0.0
    %151 = vmatpush1.msra.mxu0 %v137
    %152 = vmatprep.subr.mxu0 0.0
    %153 = vmatpush1.msra.mxu0 %v138
    %154 = vmatprep.subr.mxu0 0.0
    %155 = vmatpush1.msra.mxu0 0.0
    %156 = vmatprep.subr.mxu0 0.0
    %157 = vmatpush1.msra.mxu0 0.0
    %158 = vmatprep.subr.mxu0 0.0
    %159 = vmatpush1.msra.mxu0 0.0
    %160 = vmatprep.subr.mxu0 0.0
    %161 = vmatpush1.msra.mxu0 0.0
    %162 = vmatprep.subr.mxu0 0.0
    %163 = vmatpush1.msra.mxu0 0.0
    %164 = vmatprep.subr.mxu0 0.0
    %165 = vmatpush1.msra.mxu0 0.0
    %166 = vmatprep.subr.mxu0 0.0
    %167 = vmatpush1.msra.mxu0 0.0
    %168 = vmatprep.subr.mxu0 0.0
    %169 = vmatpush1.msra.mxu0 0.0
    %170 = vmatprep.subr.mxu0 0.0
    %171 = vmatpush1.msra.mxu0 0.0
    %172 = vmatprep.subr.mxu0 0.0
    %173 = vmatpush1.msra.mxu0 0.0
    %174 = vmatprep.subr.mxu0 0.0
    %175 = vmatpush1.msra.mxu0 0.0
    %176 = vmatprep.subr.mxu0 0.0
    %177 = vmatpush1.msra.mxu0 0.0
    %178 = vmatprep.subr.mxu0 0.0
    %179 = vmatpush1.msra.mxu0 0.0
    %180 = vmatprep.subr.mxu0 0.0
    %181 = vmatpush1.msra.mxu0 0.0
    %182 = vmatprep.subr.mxu0 0.0
    %183 = vmatpush1.msra.mxu0 0.0
    %184 = vmatprep.subr.mxu0 0.0
    %185 = vmatpush1.msra.mxu0 0.0
    %186 = vmatprep.subr.mxu0 0.0
    %187 = vmatpush1.msra.mxu0 0.0
    %188 = vmatprep.subr.mxu0 0.0
    %189 = vmatpush1.msra.mxu0 0.0
    %190 = vmatprep.subr.mxu0 0.0
    %191 = vmatpush1.msra.mxu0 0.0
    %192 = vmatprep.subr.mxu0 0.0
    %193 = vmatpush1.msra.mxu0 0.0
    %194 = vmatprep.subr.mxu0 0.0
    %195 = vmatpush1.msra.mxu0 0.0
    %196 = vmatprep.subr.mxu0 0.0
    %197 = vmatpush1.msra.mxu0 0.0
    %198 = vmatprep.subr.mxu0 0.0
    %199 = vmatpush1.msra.mxu0 0.0
    %200 = vmatprep.subr.mxu0 0.0
    %201 = vmatpush1.msra.mxu0 0.0
    %202 = vmatprep.subr.mxu0 0.0
    %203 = vmatpush1.msra.mxu0 0.0
    %204 = vmatprep.subr.mxu0 0.0
    %205 = vmatpush1.msra.mxu0 0.0
    %206 = vmatprep.subr.mxu0 0.0
    %207 = vmatpush1.msra.mxu0 0.0
    %208 = vmatprep.subr.mxu0 0.0
    %209 = vmatpush1.msra.mxu0 0.0
    %210 = vmatprep.subr.mxu0 0.0
    %211 = vmatpush1.msra.mxu0 0.0
    %212 = vmatprep.subr.mxu0 0.0
    %213 = vmatpush1.msra.mxu0 0.0
    %214 = vmatprep.mubr.f32.mxu0 0.0
    %215 = vmatmul.mubr.f32.gmra.mrb[0].mxu0 %v148
    %v216 = vpop.f32.mrb[0].mxu0
    %v217 = vadd.f32 %v144, %v216
    %v218 = vpop.f32.mrb[0].mxu0
    %219 = vdwg.mxu0
    %v220 = vmul.f32 %v217, 0.5
    %v221 = vmul.f32 %v217, 0.70710677
    %v222 = verf.f32.pop %v221
    %v223 = vadd.f32 %v222, 1.0
    %v224 = vmul.f32 %v220, %v223
    %v225 = vld [vmem:[%s5] sm:$0x1]
    %v226 = vld [vmem:[#allocation2] sm:$0x1]
    %228 = vset.pattern.permute.xlu0 0
    %229 = vperm.xlu0 %228, %v226
    %v230 = vpop.permute.xlu0 %229
    %v232 = vlaneseq
    %v233 = vshrl.u32 %v232, 7
    %v234 = vsub.s32 0, %v233
    %v235 = vrot.slane %v230, %v234
    %vm236 = vcmask 64512
    %v238 = vsel %vm236, %v225, 0
    %240 = vmatprep.subr.mxu0 0.0
    %241 = vmatpush1.msra.mxu0 %v224
    %242 = vmatprep.subr.mxu0 0.0
    %243 = vmatpush1.msra.mxu0 0.0
    %244 = vmatprep.subr.mxu0 0.0
    %245 = vmatpush1.msra.mxu0 0.0
    %246 = vmatprep.subr.mxu0 0.0
    %247 = vmatpush1.msra.mxu0 0.0
    %248 = vmatprep.subr.mxu0 0.0
    %249 = vmatpush1.msra.mxu0 0.0
    %250 = vmatprep.subr.mxu0 0.0
    %251 = vmatpush1.msra.mxu0 0.0
    %252 = vmatprep.subr.mxu0 0.0
    %253 = vmatpush1.msra.mxu0 0.0
    %254 = vmatprep.subr.mxu0 0.0
    %255 = vmatpush1.msra.mxu0 0.0
    %256 = vmatprep.subr.mxu0 0.0
    %257 = vmatpush1.msra.mxu0 0.0
    %258 = vmatprep.subr.mxu0 0.0
    %259 = vmatpush1.msra.mxu0 0.0
    %260 = vmatprep.subr.mxu0 0.0
    %261 = vmatpush1.msra.mxu0 0.0
    %262 = vmatprep.subr.mxu0 0.0
    %263 = vmatpush1.msra.mxu0 0.0
    %264 = vmatprep.subr.mxu0 0.0
    %265 = vmatpush1.msra.mxu0 0.0
    %266 = vmatprep.subr.mxu0 0.0
    %267 = vmatpush1.msra.mxu0 0.0
    %268 = vmatprep.subr.mxu0 0.0
    %269 = vmatpush1.msra.mxu0 0.0
    %270 = vmatprep.subr.mxu0 0.0
    %271 = vmatpush1.msra.mxu0 0.0
    %272 = vmatprep.subr.mxu0 0.0
    %273 = vmatpush1.msra.mxu0 0.0
    %274 = vmatprep.subr.mxu0 0.0
    %275 = vmatpush1.msra.mxu0 0.0
    %276 = vmatprep.subr.mxu0 0.0
    %277 = vmatpush1.msra.mxu0 0.0
    %278 = vmatprep.subr.mxu0 0.0
    %279 = vmatpush1.msra.mxu0 0.0
    %280 = vmatprep.subr.mxu0 0.0
    %281 = vmatpush1.msra.mxu0 0.0
    %282 = vmatprep.subr.mxu0 0.0
    %283 = vmatpush1.msra.mxu0 0.0
    %284 = vmatprep.subr.mxu0 0.0
    %285 = vmatpush1.msra.mxu0 0.0
    %286 = vmatprep.subr.mxu0 0.0
    %287 = vmatpush1.msra.mxu0 0.0
    %288 = vmatprep.subr.mxu0 0.0
    %289 = vmatpush1.msra.mxu0 0.0
    %290 = vmatprep.subr.mxu0 0.0
    %291 = vmatpush1.msra.mxu0 0.0
    %292 = vmatprep.subr.mxu0 0.0
    %293 = vmatpush1.msra.mxu0 0.0
    %294 = vmatprep.subr.mxu0 0.0
    %295 = vmatpush1.msra.mxu0 0.0
    %296 = vmatprep.subr.mxu0 0.0
    %297 = vmatpush1.msra.mxu0 0.0
    %298 = vmatprep.subr.mxu0 0.0
    %299 = vmatpush1.msra.mxu0 0.0
    %300 = vmatprep.subr.mxu0 0.0
    %301 = vmatpush1.msra.mxu0 0.0
    %302 = vmatprep.subr.mxu0 0.0
    %303 = vmatpush1.msra.mxu0 0.0
    %304 = vmatprep.mubr.f32.mxu0 0.0
    %305 = vmatmul.mubr.f32.gmra.mrb[0].mxu0 %v238
    %v306 = vpop.f32.mrb[0].mxu0
    %v307 = vadd.f32 %v235, %v306
    %v308 = vpop.f32.mrb[0].mxu0
    %309 = vdwg.mxu0
    %vm310 = vcmask 57344
    %311 = vst.msk [vmem:[#allocation3] sm:$0x1] %vm310, %v307
    // Predicated region
    $region30: #{tpu_custom_call.1} parent=1 // pred_check
      _
    $region31: #{tpu_custom_call.1} parent=1 // pred_check_branch
      %313 = sbr.rel (0) target = $region33
    $region32: #{tpu_custom_call.1} parent=1 // pred_region
      %s315 = ssub.s32 16, 16
      %316 = vsyncadd [#allocation4], %s315
      %s318 = sshll.u32 [#allocation3], 4
      %s319 = int_to_ptr.vmem [resolvable:$true] %s318
      %321 = dma.vmem_to_hbm [thread:$0]  %s319, 16, %s7, [#allocation4]
    $region33: #{tpu_custom_call.1} parent=1 // pred_fallthru
      _
    // Predicated region
    $region34: #{tpu_custom_call.1} parent=1 // pred_check
      _
    $region35: #{tpu_custom_call.1} parent=1 // pred_check_branch
      %323 = sbr.rel (0) target = $region37
    $region36: #{tpu_custom_call.1} parent=1 // pred_region
      %324 = dma.done [#allocation4], 16
    $region37: #{tpu_custom_call.1} parent=1 // pred_fallthru
      _
    %325 = vsyncpa [#allocation4], 1

</llo_original>
